<compile_context>
chip_gen: v7x
topology: tpu7x:2x2x1
jax: 0.10.0
libtpu: 0.0.40
codegen_flags: <defaults>
</compile_context>

<pallas_src>
import functools
import math

import jax
import jax.numpy as jnp
from jax.experimental import pallas as pl
from jax.experimental.pallas import tpu as pltpu


def _round_up(x, mult):
    return ((x + mult - 1) // mult) * mult


def _arcloss_kernel(x_ref, w_ref, label_ref, out_ref, cosa_ref, *, s, cos_m, sin_m):
    x = x_ref[...]                       # (tm, D) f32
    w = w_ref[...]                       # (tn, D) f32
    labels = label_ref[...]              # (tm, 1) int32

    tm, tn = out_ref.shape

    # Raw X @ W^T on the MXU; contraction over D expressed directly so the
    # (tn, D) weight tile is never transposed in VMEM.
    raw = jax.lax.dot_general(
        x, w, dimension_numbers=(((1,), (1,)), ((), ())),
        preferred_element_type=jnp.float32)                      # (tm, tn)

    # Deferred L2 normalization.  F.normalize divides by max(||x||, eps) with
    # eps = 1e-12; rsqrt(max(||x||^2, eps^2)) == 1 / max(||x||, eps) exactly.
    eps2 = jnp.float32(1e-24)
    x_sq = jnp.sum(x * x, axis=-1, keepdims=True)                # (tm, 1)
    inv_x = jax.lax.rsqrt(jnp.maximum(x_sq, eps2))               # (tm, 1)  EUP

    # W row-norms produced lane-major via a ones-row matvec on the MXU
    # (result is (1, tn): no cross-lane transpose needed for the broadcast).
    ones_row = jnp.ones((1, w.shape[1]), jnp.float32)
    w_sq = jax.lax.dot_general(
        ones_row, w * w, dimension_numbers=(((1,), (1,)), ((), ())),
        preferred_element_type=jnp.float32)                      # (1, tn)
    inv_w = jax.lax.rsqrt(jnp.maximum(w_sq, eps2))               # (1, tn)  EUP

    # cosa = F.linear(Xn, Wn) / 10
    cosa = raw * (inv_x * jnp.float32(0.1)) * inv_w              # (tm, tn)

    # cos(acos(c) + m) = c*cos(m) - sqrt(1 - c^2)*sin(m)   (exact for |c| <= 1)
    sina = jnp.sqrt(jnp.maximum(jnp.float32(1.0) - cosa * cosa, jnp.float32(0.0)))
    cosam = cosa * jnp.float32(cos_m) - sina * jnp.float32(sin_m)
    cosam = jnp.where(cosa > 0, cosam, cosa)                     # easy_margin=True

    # One-hot blend collapsed to a single select, using *global* column indices
    # (this grid step covers classes [j*tn, j*tn + tn)).
    col0 = pl.program_id(1) * tn
    col_ids = col0 + jax.lax.broadcasted_iota(jnp.int32, (tm, tn), 1)
    out = jnp.float32(s) * jnp.where(col_ids == labels, cosam, cosa)

    out_ref[...] = out
    cosa_ref[...] = cosa


def arcloss_forward(x, weight, label, *, s=64.0, m=0.5, tm=256, tn=512):
    """x: (N, D) f32, weight: (C, D) f32, label: (N,) int -> (output, cosa), both (N, C) f32."""
    n, d = x.shape
    c, d2 = weight.shape
    assert d == d2

    x = x.astype(jnp.float32)
    weight = weight.astype(jnp.float32)

    # Sublane-aligned batch tile, lane-aligned (multiple of 128) class tile.
    tm = min(tm, _round_up(n, 8))
    tn = min(tn, _round_up(c, 128))

    n_pad = _round_up(n, tm)
    c_pad = _round_up(c, tn)
    d_pad = _round_up(d, 128)        # zero-pad of the contraction dim is exact

    x_p = jnp.zeros((n_pad, d_pad), jnp.float32).at[:n, :d].set(x)
    w_p = jnp.zeros((c_pad, d_pad), jnp.float32).at[:c, :d].set(weight)
    lbl = jnp.full((n_pad, 1), -1, jnp.int32).at[:n, 0].set(label.astype(jnp.int32))

    grid = (n_pad // tm, c_pad // tn)

    kernel = functools.partial(
        _arcloss_kernel, s=float(s), cos_m=math.cos(m), sin_m=math.sin(m))

    # Double-buffered VMEM footprint (inputs + outputs) plus headroom for f32
    # intermediates; clamped so the limit is safe on v5e/v6e (128 MiB physical)
    # and on v7x (64 MiB physical).
    fp32 = 4
    vmem_est = 2 * (tm * d_pad + tn * d_pad + tm) * fp32     # double-buffered inputs
    vmem_est += 2 * 2 * tm * tn * fp32                       # double-buffered outputs
    vmem_est += 6 * tm * tn * fp32                           # live intermediates
    vmem_limit = int(min(max(2 * vmem_est, 16 * 1024 * 1024), 48 * 1024 * 1024))

    out_p, cosa_p = pl.pallas_call(
        kernel,
        out_shape=(
            jax.ShapeDtypeStruct((n_pad, c_pad), jnp.float32),   # output
            jax.ShapeDtypeStruct((n_pad, c_pad), jnp.float32),   # cosa
        ),
        grid=grid,
        in_specs=[
            pl.BlockSpec((tm, d_pad), lambda i, j: (i, 0)),      # X rows (reused over j)
            pl.BlockSpec((tn, d_pad), lambda i, j: (j, 0)),      # W rows (streamed over C)
            pl.BlockSpec((tm, 1), lambda i, j: (i, 0)),          # labels
        ],
        out_specs=(
            pl.BlockSpec((tm, tn), lambda i, j: (i, j)),
            pl.BlockSpec((tm, tn), lambda i, j: (i, j)),
        ),
        compiler_params=pltpu.CompilerParams(
            dimension_semantics=("parallel", "parallel"),
            vmem_limit_bytes=vmem_limit,
        ),
    )(x_p, w_p, lbl)

    return out_p[:n, :c], cosa_p[:n, :c]


def _reference(x, weight, label, *, s=64.0, m=0.5):
    eps = 1e-12
    xn = x / jnp.maximum(jnp.linalg.norm(x, axis=1, keepdims=True), eps)
    wn = weight / jnp.maximum(jnp.linalg.norm(weight, axis=1, keepdims=True), eps)
    cosa = (xn @ wn.T) / 10.0
    a = jnp.arccos(cosa)
    cosam = jnp.cos(a + m)
    cosam = jnp.where(cosa > 0, cosam, cosa)          # easy_margin=True
    one_hot = jax.nn.one_hot(label, weight.shape[0], dtype=jnp.float32)
    out = s * (one_hot * cosam) + s * ((1.0 - one_hot) * cosa)
    return out, cosa


if __name__ == "__main__":
    key = jax.random.PRNGKey(0)
    k_x, k_w, k_l = jax.random.split(key, 3)

    N, IN_F, OUT_F = 8, 32, 16

    x = jax.random.normal(k_x, (N, IN_F), dtype=jnp.float32)
    label = jax.random.randint(k_l, (N,), 0, OUT_F, dtype=jnp.int32)

    # Deterministic xavier_uniform init for weight of shape (out_features, in_features)
    bound = math.sqrt(6.0 / (IN_F + OUT_F))
    weight = jax.random.uniform(
        k_w, (OUT_F, IN_F), dtype=jnp.float32, minval=-bound, maxval=bound
    )

    out, cosa = arcloss_forward(x, weight, label, s=64.0, m=0.5)
    jax.block_until_ready(out)
    jax.block_until_ready(cosa)

    out_ref, cosa_ref = _reference(x, weight, label, s=64.0, m=0.5)
    assert jnp.allclose(cosa, cosa_ref, atol=1e-5, rtol=1e-4), "cosa mismatch"
    assert jnp.allclose(out, out_ref, atol=1e-3, rtol=1e-4), "output mismatch"

    print("KERNEL_OK")
</pallas_src>

<mosaic_0001>
module attributes {stable_mosaic.version = 11 : i64} {
  func.func @_arcloss_kernel(%arg0: i32, %arg1: i32, %arg2: memref<8x128xf32, #tpu.memory_space<vmem>>, %arg3: memref<128x128xf32, #tpu.memory_space<vmem>>, %arg4: memref<8x1xi32, #tpu.memory_space<vmem>>, %arg5: memref<8x128xf32, #tpu.memory_space<vmem>>, %arg6: memref<8x128xf32, #tpu.memory_space<vmem>>) attributes {dimension_semantics = [#tpu.dimension_semantics<parallel>, #tpu.dimension_semantics<parallel>], iteration_bounds = array<i64: 1, 1>, scalar_prefetch = 0 : i64, scratch_operands = 0 : i64, tpu.core_type = #tpu.core_type<tc>, window_params = [{transform_indices = @transform_0, window_bounds = array<i64: 8, 128>}, {transform_indices = @transform_1, window_bounds = array<i64: 128, 128>}, {transform_indices = @transform_2, window_bounds = array<i64: 8, 1>}, {transform_indices = @transform_3, window_bounds = array<i64: 8, 128>}, {transform_indices = @transform_4, window_bounds = array<i64: 8, 128>}]} {
    %c0 = arith.constant 0 : index
    %c0_0 = arith.constant 0 : index
    %0 = vector.load %arg2[%c0, %c0_0] : memref<8x128xf32, #tpu.memory_space<vmem>>, vector<8x128xf32>
    %c0_1 = arith.constant 0 : index
    %c0_2 = arith.constant 0 : index
    %1 = vector.load %arg3[%c0_1, %c0_2] : memref<128x128xf32, #tpu.memory_space<vmem>>, vector<128x128xf32>
    %c0_3 = arith.constant 0 : index
    %c0_4 = arith.constant 0 : index
    %2 = vector.load %arg4[%c0_3, %c0_4] : memref<8x1xi32, #tpu.memory_space<vmem>>, vector<8x1xi32>
    %cst = arith.constant dense<0.000000e+00> : vector<8x128xf32>
    %3 = tpu.matmul %0, %1, %cst {dimension_numbers = #tpu.dot_dimension_numbers<[1], [1], [0], [0], [0, 0, 1, 0], [], []>} : vector<8x128xf32>, vector<128x128xf32>, vector<8x128xf32> -> vector<8x128xf32>
    %4 = arith.mulf %0, %0 : vector<8x128xf32>
    %cst_5 = arith.constant dense<0.000000e+00> : vector<8xf32>
    %5 = vector.multi_reduction <add>, %4, %cst_5 [1] : vector<8x128xf32> to vector<8xf32>
    %6 = vector.shape_cast %5 : vector<8xf32> to vector<8x1xf32>
    %cst_6 = arith.constant 1.000000e-24 : f32
    %7 = vector.broadcast %cst_6 : f32 to vector<8x1xf32>
    %8 = arith.maximumf %6, %7 : vector<8x1xf32>
    %9 = math.rsqrt %8 : vector<8x1xf32>
    %cst_7 = arith.constant 1.000000e+00 : f32
    %10 = vector.broadcast %cst_7 : f32 to vector<1x128xf32>
    %11 = arith.mulf %1, %1 : vector<128x128xf32>
    %cst_8 = arith.constant dense<0.000000e+00> : vector<1x128xf32>
    %12 = tpu.matmul %10, %11, %cst_8 {dimension_numbers = #tpu.dot_dimension_numbers<[1], [1], [0], [0], [0, 0, 1, 0], [], []>} : vector<1x128xf32>, vector<128x128xf32>, vector<1x128xf32> -> vector<1x128xf32>
    %cst_9 = arith.constant 1.000000e-24 : f32
    %13 = vector.broadcast %cst_9 : f32 to vector<1x128xf32>
    %14 = arith.maximumf %12, %13 : vector<1x128xf32>
    %15 = math.rsqrt %14 : vector<1x128xf32>
    %cst_10 = arith.constant 1.000000e-01 : f32
    %16 = vector.broadcast %cst_10 : f32 to vector<8x1xf32>
    %17 = arith.mulf %9, %16 : vector<8x1xf32>
    %18 = vector.broadcast %17 : vector<8x1xf32> to vector<8x128xf32>
    %19 = arith.mulf %3, %18 : vector<8x128xf32>
    %20 = vector.broadcast %15 : vector<1x128xf32> to vector<8x128xf32>
    %21 = arith.mulf %19, %20 : vector<8x128xf32>
    %22 = arith.mulf %21, %21 : vector<8x128xf32>
    %cst_11 = arith.constant 1.000000e+00 : f32
    %23 = vector.broadcast %cst_11 : f32 to vector<8x128xf32>
    %24 = arith.subf %23, %22 : vector<8x128xf32>
    %cst_12 = arith.constant 0.000000e+00 : f32
    %25 = vector.broadcast %cst_12 : f32 to vector<8x128xf32>
    %26 = arith.maximumf %24, %25 : vector<8x128xf32>
    %27 = math.sqrt %26 : vector<8x128xf32>
    %cst_13 = arith.constant 0.87758255 : f32
    %28 = vector.broadcast %cst_13 : f32 to vector<8x128xf32>
    %29 = arith.mulf %21, %28 : vector<8x128xf32>
    %cst_14 = arith.constant 0.47942555 : f32
    %30 = vector.broadcast %cst_14 : f32 to vector<8x128xf32>
    %31 = arith.mulf %27, %30 : vector<8x128xf32>
    %32 = arith.subf %29, %31 : vector<8x128xf32>
    %cst_15 = arith.constant 0.000000e+00 : f32
    %33 = vector.broadcast %cst_15 : f32 to vector<8x128xf32>
    %34 = arith.cmpf ogt, %21, %33 : vector<8x128xf32>
    %35 = arith.select %34, %32, %21 : vector<8x128xi1>, vector<8x128xf32>
    %c128_i32 = arith.constant 128 : i32
    %36 = arith.muli %arg1, %c128_i32 : i32
    %37 = tpu.iota {dimensions = array<i32: 1>} : vector<8x128xi32>
    %38 = vector.broadcast %36 : i32 to vector<8x128xi32>
    %39 = arith.addi %38, %37 : vector<8x128xi32>
    %40 = vector.broadcast %2 : vector<8x1xi32> to vector<8x128xi32>
    %41 = arith.cmpi eq, %39, %40 : vector<8x128xi32>
    %42 = arith.select %41, %35, %21 : vector<8x128xi1>, vector<8x128xf32>
    %cst_16 = arith.constant 6.400000e+01 : f32
    %43 = vector.broadcast %cst_16 : f32 to vector<8x128xf32>
    %44 = arith.mulf %43, %42 : vector<8x128xf32>
    %c0_17 = arith.constant 0 : index
    %c0_18 = arith.constant 0 : index
    %45 = vector.load %arg5[%c0_17, %c0_18] : memref<8x128xf32, #tpu.memory_space<vmem>>, vector<8x128xf32>
    tpu.vector_store %arg5[%c0_17, %c0_18], %44 {strides = array<i32>} : memref<8x128xf32, #tpu.memory_space<vmem>>, vector<8x128xf32>,
    %c0_19 = arith.constant 0 : index
    %c0_20 = arith.constant 0 : index
    %46 = vector.load %arg6[%c0_19, %c0_20] : memref<8x128xf32, #tpu.memory_space<vmem>>, vector<8x128xf32>
    tpu.vector_store %arg6[%c0_19, %c0_20], %21 {strides = array<i32>} : memref<8x128xf32, #tpu.memory_space<vmem>>, vector<8x128xf32>,
    return
  }
  func.func @transform_0(%arg0: i32, %arg1: i32) -> (i32, i32) {
    %c0_i32 = arith.constant 0 : i32
    %c0_i32_0 = arith.constant 0 : i32
    return %arg0, %c0_i32 : i32, i32
  }
  func.func @transform_1(%arg0: i32, %arg1: i32) -> (i32, i32) {
    %c0_i32 = arith.constant 0 : i32
    %c0_i32_0 = arith.constant 0 : i32
    return %arg1, %c0_i32 : i32, i32
  }
  func.func @transform_2(%arg0: i32, %arg1: i32) -> (i32, i32) {
    %c0_i32 = arith.constant 0 : i32
    %c0_i32_0 = arith.constant 0 : i32
    return %arg0, %c0_i32 : i32, i32
  }
  func.func @transform_3(%arg0: i32, %arg1: i32) -> (i32, i32) {
    %c0_i32 = arith.constant 0 : i32
    return %arg0, %arg1 : i32, i32
  }
  func.func @transform_4(%arg0: i32, %arg1: i32) -> (i32, i32) {
    %c0_i32 = arith.constant 0 : i32
    return %arg0, %arg1 : i32, i32
  }
}

</mosaic_0001>

<llo_original>
// kernel: tpu_custom_call.1
$region0: #{tpu_custom_call.1}
  #allocation0 [shape = 'u32[]', space=smem, size = 0x4, offset = 0x4, fixed_abs, tag = 'smem constant byte address 0x4 - core index']
  #allocation1 [shape = 'u32[144,128]{1,0:T(1,128)}', space=vmem, size = 0x12000, scoped, tag = 'internal scratch']
  %s0 = inlined_call_operand.vmem [shape: f32[8,128], index: 0, kind: input, shape index: {}]
  %s1 = inlined_call_operand.hbm [shape: f32[128,128], index: 1, kind: input, shape index: {}]
  %s2 = inlined_call_operand.vmem [shape: s32[8,1], index: 2, kind: input, shape index: {}]
  %s3 = inlined_call_operand.hbm [shape: f32[8,128], index: 3, kind: output, shape index: {0}]
  %s4 = inlined_call_operand.hbm [shape: f32[8,128], index: 4, kind: output, shape index: {1}]
  %5 = xla_tuple %s3, %s4
  %s6 = sld [smem:[#allocation0]]
  $region34: #{tpu_custom_call.1} parent=0
    _
  %s8 = ssub.s32 1, %s6
  %s9 = scalar_select 0, %s8, %s6
  $region1: #{tpu_custom_call.1} parent=0
    #allocation2 [shape = 'u8[65536]{0}', space=vmem, size = 0x10000, scoped, tag = 'input window, operand 1, single buffered']
    #allocation3 [shape = 's32[1]{0}', space=sflag, size = 0x4, scoped, tag = 'scoped memory for tpu_custom_call.1']
    #allocation4 [shape = 's32[1]{0}', space=sflag, size = 0x4, scoped, tag = 'scoped memory for tpu_custom_call.1']
    #allocation5 [shape = 'u8[4096]{0}', space=vmem, size = 0x1000, scoped, tag = 'output window, operand 0, single buffered']
    #allocation6 [shape = 'u8[4096]{0}', space=vmem, size = 0x1000, scoped, tag = 'output window, operand 1, single buffered']
    #allocation7 [shape = 's32[1]{0}', space=sflag, size = 0x4, scoped, tag = 'scoped memory for tpu_custom_call.1']
    %10 = vsyncpa [#allocation3], 0
    %11 = vsyncpa [#allocation4], 0
    %12 = vsyncpa [#allocation7], 0
    // Predicated region
    $region2: #{tpu_custom_call.1} parent=1 // pred_check
      _
    $region3: #{tpu_custom_call.1} parent=1 // pred_check_branch
      %14 = sbr.rel (0) target = $region5
    $region4: #{tpu_custom_call.1} parent=1 // pred_region
      _
    $region5: #{tpu_custom_call.1} parent=1 // pred_fallthru
      _
    // Predicated region
    $region6: #{tpu_custom_call.1} parent=1 // pred_check
      _
    $region7: #{tpu_custom_call.1} parent=1 // pred_check_branch
      %16 = sbr.rel (0) target = $region9
    $region8: #{tpu_custom_call.1} parent=1 // pred_region
      %s18 = ssub.s32 2048, 2048
      %19 = vsyncadd [#allocation3], %s18
      %s20 = sshll.u32 [#allocation2], 4
      %s21 = int_to_ptr.vmem [resolvable:$true] %s20
      %26 = dma.hbm_to_vmem [thread:$0]  %s1, 2048, %s21, [#allocation3], 128, 128, 8
    $region9: #{tpu_custom_call.1} parent=1 // pred_fallthru
      _
    // Predicated region
    $region10: #{tpu_custom_call.1} parent=1 // pred_check
      _
    $region11: #{tpu_custom_call.1} parent=1 // pred_check_branch
      %28 = sbr.rel (0) target = $region13
    $region12: #{tpu_custom_call.1} parent=1 // pred_region
      _
    $region13: #{tpu_custom_call.1} parent=1 // pred_fallthru
      _
    // Predicated region
    $region14: #{tpu_custom_call.1} parent=1 // pred_check
      _
    $region15: #{tpu_custom_call.1} parent=1 // pred_check_branch
      %30 = sbr.rel (0) target = $region17
    $region16: #{tpu_custom_call.1} parent=1 // pred_region
      %31 = dma.done [#allocation3], 2048
    $region17: #{tpu_custom_call.1} parent=1 // pred_fallthru
      _
    %v32 = vld [vmem:[%s0] sm:$0xff]
    %v33 = vld [vmem:[#allocation2] sm:$0xff]
    %v34 = vld [vmem:[#allocation2 + $0x8] sm:$0xff]
    %v35 = vld [vmem:[#allocation2 + $0x10] sm:$0xff]
    %v36 = vld [vmem:[#allocation2 + $0x18] sm:$0xff]
    %v37 = vld [vmem:[#allocation2 + $0x20] sm:$0xff]
    %v38 = vld [vmem:[#allocation2 + $0x28] sm:$0xff]
    %v39 = vld [vmem:[#allocation2 + $0x30] sm:$0xff]
    %v40 = vld [vmem:[#allocation2 + $0x38] sm:$0xff]
    %v41 = vld [vmem:[#allocation2 + $0x40] sm:$0xff]
    %v42 = vld [vmem:[#allocation2 + $0x48] sm:$0xff]
    %v43 = vld [vmem:[#allocation2 + $0x50] sm:$0xff]
    %v44 = vld [vmem:[#allocation2 + $0x58] sm:$0xff]
    %v45 = vld [vmem:[#allocation2 + $0x60] sm:$0xff]
    %v46 = vld [vmem:[#allocation2 + $0x68] sm:$0xff]
    %v47 = vld [vmem:[#allocation2 + $0x70] sm:$0xff]
    %v48 = vld [vmem:[#allocation2 + $0x78] sm:$0xff]
    %v49 = vld [vmem:[%s2] sm:$0xff]
    %50 = vmatprep.subr.mxu0 0.0
    %51 = vmatpush1.xpose.msra.mxu0 %v33
    %52 = vmatprep.subr.mxu0 0.0
    %53 = vmatpush1.xpose.msra.mxu0 %v34
    %54 = vmatprep.subr.mxu0 0.0
    %55 = vmatpush1.xpose.msra.mxu0 %v35
    %56 = vmatprep.subr.mxu0 0.0
    %57 = vmatpush1.xpose.msra.mxu0 %v36
    %58 = vmatprep.subr.mxu0 0.0
    %59 = vmatpush1.xpose.msra.mxu0 %v37
    %60 = vmatprep.subr.mxu0 0.0
    %61 = vmatpush1.xpose.msra.mxu0 %v38
    %62 = vmatprep.subr.mxu0 0.0
    %63 = vmatpush1.xpose.msra.mxu0 %v39
    %64 = vmatprep.subr.mxu0 0.0
    %65 = vmatpush1.xpose.msra.mxu0 %v40
    %66 = vmatprep.subr.mxu0 0.0
    %67 = vmatpush1.xpose.msra.mxu0 %v41
    %68 = vmatprep.subr.mxu0 0.0
    %69 = vmatpush1.xpose.msra.mxu0 %v42
    %70 = vmatprep.subr.mxu0 0.0
    %71 = vmatpush1.xpose.msra.mxu0 %v43
    %72 = vmatprep.subr.mxu0 0.0
    %73 = vmatpush1.xpose.msra.mxu0 %v44
    %74 = vmatprep.subr.mxu0 0.0
    %75 = vmatpush1.xpose.msra.mxu0 %v45
    %76 = vmatprep.subr.mxu0 0.0
    %77 = vmatpush1.xpose.msra.mxu0 %v46
    %78 = vmatprep.subr.mxu0 0.0
    %79 = vmatpush1.xpose.msra.mxu0 %v47
    %80 = vmatprep.subr.mxu0 0.0
    %81 = vmatpush1.xpose.msra.mxu0 %v48
    %82 = vmatprep.subr.mxu0 0.0
    %83 = vmatpush1.xpose.msra.mxu0 0.0
    %84 = vmatprep.subr.mxu0 0.0
    %85 = vmatpush1.xpose.msra.mxu0 0.0
    %86 = vmatprep.subr.mxu0 0.0
    %87 = vmatpush1.xpose.msra.mxu0 0.0
    %88 = vmatprep.subr.mxu0 0.0
    %89 = vmatpush1.xpose.msra.mxu0 0.0
    %90 = vmatprep.subr.mxu0 0.0
    %91 = vmatpush1.xpose.msra.mxu0 0.0
    %92 = vmatprep.subr.mxu0 0.0
    %93 = vmatpush1.xpose.msra.mxu0 0.0
    %94 = vmatprep.subr.mxu0 0.0
    %95 = vmatpush1.xpose.msra.mxu0 0.0
    %96 = vmatprep.subr.mxu0 0.0
    %97 = vmatpush1.xpose.msra.mxu0 0.0
    %98 = vmatprep.subr.mxu0 0.0
    %99 = vmatpush1.xpose.msra.mxu0 0.0
    %100 = vmatprep.subr.mxu0 0.0
    %101 = vmatpush1.xpose.msra.mxu0 0.0
    %102 = vmatprep.subr.mxu0 0.0
    %103 = vmatpush1.xpose.msra.mxu0 0.0
    %104 = vmatprep.subr.mxu0 0.0
    %105 = vmatpush1.xpose.msra.mxu0 0.0
    %106 = vmatprep.subr.mxu0 0.0
    %107 = vmatpush1.xpose.msra.mxu0 0.0
    %108 = vmatprep.subr.mxu0 0.0
    %109 = vmatpush1.xpose.msra.mxu0 0.0
    %110 = vmatprep.subr.mxu0 0.0
    %111 = vmatpush1.xpose.msra.mxu0 0.0
    %112 = vmatprep.subr.mxu0 0.0
    %113 = vmatpush1.xpose.msra.mxu0 0.0
    %114 = vmatprep.mubr.f32.mxu0 0.0
    %115 = vmatmul.mubr.f32.gmra.mrb[0].mxu0 %v32
    %v116 = vpop.f32.mrb[0].mxu0
    %v117 = vadd.f32 0.0, %v116
    %v118 = vpop.f32.mrb[0].mxu0
    %119 = vdwg.mxu0
    %v120 = vmul.f32 %v32, %v32
    %121 = vadd.xlane.f32.xlu0 %v120
    %v122 = vpop.xlane.xlu0 %121
    %v123 = vmax.f32 %v122, 1e-24
    %v124 = vrsqrt.pop %v123
    %v125 = vmul.f32 %v33, %v33
    %v126 = vmul.f32 %v34, %v34
    %v127 = vmul.f32 %v35, %v35
    %v128 = vmul.f32 %v36, %v36
    %v129 = vmul.f32 %v37, %v37
    %v130 = vmul.f32 %v38, %v38
    %v131 = vmul.f32 %v39, %v39
    %v132 = vmul.f32 %v40, %v40
    %v133 = vmul.f32 %v41, %v41
    %v134 = vmul.f32 %v42, %v42
    %v135 = vmul.f32 %v43, %v43
    %v136 = vmul.f32 %v44, %v44
    %v137 = vmul.f32 %v45, %v45
    %v138 = vmul.f32 %v46, %v46
    %v139 = vmul.f32 %v47, %v47
    %v140 = vmul.f32 %v48, %v48
    %141 = vmatprep.subr.mxu0 0.0
    %142 = vmatpush1.xpose.msra.mxu0 %v125
    %143 = vmatprep.subr.mxu0 0.0
    %144 = vmatpush1.xpose.msra.mxu0 %v126
    %145 = vmatprep.subr.mxu0 0.0
    %146 = vmatpush1.xpose.msra.mxu0 %v127
    %147 = vmatprep.subr.mxu0 0.0
    %148 = vmatpush1.xpose.msra.mxu0 %v128
    %149 = vmatprep.subr.mxu0 0.0
    %150 = vmatpush1.xpose.msra.mxu0 %v129
    %151 = vmatprep.subr.mxu0 0.0
    %152 = vmatpush1.xpose.msra.mxu0 %v130
    %153 = vmatprep.subr.mxu0 0.0
    %154 = vmatpush1.xpose.msra.mxu0 %v131
    %155 = vmatprep.subr.mxu0 0.0
    %156 = vmatpush1.xpose.msra.mxu0 %v132
    %157 = vmatprep.subr.mxu0 0.0
    %158 = vmatpush1.xpose.msra.mxu0 %v133
    %159 = vmatprep.subr.mxu0 0.0
    %160 = vmatpush1.xpose.msra.mxu0 %v134
    %161 = vmatprep.subr.mxu0 0.0
    %162 = vmatpush1.xpose.msra.mxu0 %v135
    %163 = vmatprep.subr.mxu0 0.0
    %164 = vmatpush1.xpose.msra.mxu0 %v136
    %165 = vmatprep.subr.mxu0 0.0
    %166 = vmatpush1.xpose.msra.mxu0 %v137
    %167 = vmatprep.subr.mxu0 0.0
    %168 = vmatpush1.xpose.msra.mxu0 %v138
    %169 = vmatprep.subr.mxu0 0.0
    %170 = vmatpush1.xpose.msra.mxu0 %v139
    %171 = vmatprep.subr.mxu0 0.0
    %172 = vmatpush1.xpose.msra.mxu0 %v140
    %173 = vmatprep.subr.mxu0 0.0
    %174 = vmatpush1.xpose.msra.mxu0 0.0
    %175 = vmatprep.subr.mxu0 0.0
    %176 = vmatpush1.xpose.msra.mxu0 0.0
    %177 = vmatprep.subr.mxu0 0.0
    %178 = vmatpush1.xpose.msra.mxu0 0.0
    %179 = vmatprep.subr.mxu0 0.0
    %180 = vmatpush1.xpose.msra.mxu0 0.0
    %181 = vmatprep.subr.mxu0 0.0
    %182 = vmatpush1.xpose.msra.mxu0 0.0
    %183 = vmatprep.subr.mxu0 0.0
    %184 = vmatpush1.xpose.msra.mxu0 0.0
    %185 = vmatprep.subr.mxu0 0.0
    %186 = vmatpush1.xpose.msra.mxu0 0.0
    %187 = vmatprep.subr.mxu0 0.0
    %188 = vmatpush1.xpose.msra.mxu0 0.0
    %189 = vmatprep.subr.mxu0 0.0
    %190 = vmatpush1.xpose.msra.mxu0 0.0
    %191 = vmatprep.subr.mxu0 0.0
    %192 = vmatpush1.xpose.msra.mxu0 0.0
    %193 = vmatprep.subr.mxu0 0.0
    %194 = vmatpush1.xpose.msra.mxu0 0.0
    %195 = vmatprep.subr.mxu0 0.0
    %196 = vmatpush1.xpose.msra.mxu0 0.0
    %197 = vmatprep.subr.mxu0 0.0
    %198 = vmatpush1.xpose.msra.mxu0 0.0
    %199 = vmatprep.subr.mxu0 0.0
    %200 = vmatpush1.xpose.msra.mxu0 0.0
    %201 = vmatprep.subr.mxu0 0.0
    %202 = vmatpush1.xpose.msra.mxu0 0.0
    %203 = vmatprep.subr.mxu0 0.0
    %204 = vmatpush1.xpose.msra.mxu0 0.0
    %205 = vmatprep.mubr.f32.mxu0 0.0
    %206 = vmatmul.mubr.f32.gmra.mrb[0].mxu0 1.0
    %v207 = vpop.f32.mrb[0].mxu0
    %v208 = vadd.f32 0.0, %v207
    %v209 = vpop.f32.mrb[0].mxu0
    %210 = vdwg.mxu0
    %v211 = vmax.f32 %v208, 1e-24
    %v212 = vrsqrt.pop %v211
    %v213 = vmul.f32 %v124, 0.1
    %v214 = vmul.f32 %v117, %v213
    %v215 = vlaneseq
    %v216 = vshrl.u32 %v215, 7
    %v217 = vsub.s32 0, %v216
    %v218 = vrot.slane %v212, %v217
    %v219 = vmul.f32 %v214, %v218
    %v220 = vmul.f32 %v219, %v219
    %v221 = vsub.f32 1.0, %v220
    %v222 = vmax.f32 %v221, 0.0
    %v223 = vrsqrt.pop %v222
    %v224 = vmul.f32 %v222, %v223
    %vm225 = vcmp.eq.f32.partialorder %v222, inf
    %v226 = vsel %vm225, %v222, %v224
    %vm227 = vcmp.eq.f32.partialorder %v222, 0.0
    %v228 = vand.u32 %v222, 2147483648
    %v229 = vsel %vm227, %v228, %v226
    %v230 = vmul.f32 %v219, 0.87758255
    %v231 = vmul.f32 %v229, 0.47942555
    %v232 = vsub.f32 %v230, %v231
    %vm233 = vcmp.gt.f32.partialorder %v219, 0.0
    %v234 = vsel %vm233, %v232, %v219
    %s235 = smul.u32 0, 128
    %v236 = vlaneseq
    %v237 = vand.u32 %v236, 127
    %v238 = vstv %s235
    %v239 = vadd.s32 %v238, %v237
    %240 = vset.pattern.permute.xlu0 0
    %241 = vperm.xlu0 %240, %v49
    %v242 = vpop.permute.xlu0 %241
    %vm243 = vcmp.eq.s32.totalorder %v239, %v242
    %v244 = vsel %vm243, %v234, %v219
    %v245 = vmul.f32 %v244, 64.0
    %246 = vst [vmem:[#allocation5] sm:$0xff] %v245
    %247 = vst [vmem:[#allocation6] sm:$0xff] %v219
    // Predicated region
    $region18: #{tpu_custom_call.1} parent=1 // pred_check
      _
    $region19: #{tpu_custom_call.1} parent=1 // pred_check_branch
      %249 = sbr.rel (0) target = $region21
    $region20: #{tpu_custom_call.1} parent=1 // pred_region
      %s251 = ssub.s32 128, 128
      %252 = vsyncadd [#allocation4], %s251
      %s254 = sshll.u32 [#allocation5], 4
      %s255 = int_to_ptr.vmem [resolvable:$true] %s254
      %257 = dma.vmem_to_hbm [thread:$0]  %s255, 128, %s3, [#allocation4]
    $region21: #{tpu_custom_call.1} parent=1 // pred_fallthru
      _
    // Predicated region
    $region22: #{tpu_custom_call.1} parent=1 // pred_check
      _
    $region23: #{tpu_custom_call.1} parent=1 // pred_check_branch
      %259 = sbr.rel (0) target = $region25
    $region24: #{tpu_custom_call.1} parent=1 // pred_region
      %s261 = ssub.s32 128, 128
      %262 = vsyncadd [#allocation7], %s261
      %s264 = sshll.u32 [#allocation6], 4
      %s265 = int_to_ptr.vmem [resolvable:$true] %s264
      %267 = dma.vmem_to_hbm [thread:$0]  %s265, 128, %s4, [#allocation7]
    $region25: #{tpu_custom_call.1} parent=1 // pred_fallthru
      _
    // Predicated region
    $region26: #{tpu_custom_call.1} parent=1 // pred_check
      _
    $region27: #{tpu_custom_call.1} parent=1 // pred_check_branch
      %269 = sbr.rel (0) target = $region29
    $region28: #{tpu_custom_call.1} parent=1 // pred_region
      %270 = dma.done [#allocation4], 128
    $region29: #{tpu_custom_call.1} parent=1 // pred_fallthru
      _
    // Predicated region
    $region30: #{tpu_custom_call.1} parent=1 // pred_check
      _
    $region31: #{tpu_custom_call.1} parent=1 // pred_check_branch
      %272 = sbr.rel (0) target = $region33
    $region32: #{tpu_custom_call.1} parent=1 // pred_region
      %273 = dma.done [#allocation7], 128
    $region33: #{tpu_custom_call.1} parent=1 // pred_fallthru
      _
    %274 = vsyncpa [#allocation3], 1
    %275 = vsyncpa [#allocation4], 1
    %276 = vsyncpa [#allocation7], 1

</llo_original>
